<compile_context>
chip_gen: v7x
topology: tpu7x:2x2x1
jax: 0.10.0
libtpu: 0.0.40
codegen_flags: <defaults>
</compile_context>

<pallas_src>
import math
from functools import reduce
from operator import mul

import jax
import jax.numpy as jnp
from jax.experimental import pallas as pl
from jax.experimental.pallas import tpu as pltpu


def _round_up(x, m):
    return (x + m - 1) // m * m


def _pad_and_tile(dim, align, cap):
    """Pad `dim` to a multiple of `align`, then pick the largest tile that is
    a multiple of `align`, <= cap and divides the padded extent."""
    padded = _round_up(max(int(dim), 1), align)
    tile = align
    t = align
    limit = min(cap, padded)
    while t <= limit:
        if padded % t == 0:
            tile = t
        t += align
    return padded, tile


# -----------------------------------------------------------------------------
# Kernels
# -----------------------------------------------------------------------------
def _linear_fused_kernel(x_ref, w_ref, b_ref, o_ref):
    """Single-K-step: matmul + bias fused, no accumulator scratch."""
    o_ref[...] = (
        jnp.dot(x_ref[...], w_ref[...], preferred_element_type=jnp.float32)
        + b_ref[...].astype(jnp.float32)
    ).astype(o_ref.dtype)


def _make_acc_kernel(k_axis):
    """Multi-K-step: f32 accumulator, bias folded into the k==0 init."""

    def kernel(x_ref, w_ref, b_ref, o_ref, acc_ref):
        k = pl.program_id(k_axis)

        @pl.when(k == 0)
        def _():
            acc_ref[...] = jnp.zeros_like(acc_ref) + b_ref[...].astype(jnp.float32)

        acc_ref[...] += jnp.dot(x_ref[...], w_ref[...],
                                preferred_element_type=jnp.float32)

        @pl.when(k == pl.num_programs(k_axis) - 1)
        def _():
            o_ref[...] = acc_ref[...].astype(o_ref.dtype)

    return kernel


# -----------------------------------------------------------------------------
# Parameter packing (done once at init, never per forward call)
# -----------------------------------------------------------------------------
def pack_params(weight, bias, in_features, out_features, num_agents,
                compute_dtype=jnp.bfloat16, max_tk=1024, max_tn=1024,
                check_block_diagonal=True):
    """weight: (num_out, num_in), bias: (num_out,).

    Returns a dict with the packed (pre-transposed, lane-padded, bf16) weight,
    f32 bias and the full tiling plan so the forward pass never re-derives it.
    """
    A, in_f, out_f = num_agents, in_features, out_features
    num_in, num_out = A * in_f, A * out_f
    weight = jnp.asarray(weight)
    bias = jnp.asarray(bias)
    assert weight.shape == (num_out, num_in) and bias.shape == (num_out,)

    # Per-agent (block-diagonal) layout.
    Kp, tk = _pad_and_tile(in_f, 128, max_tk)
    Np, tn = _pad_and_tile(out_f, 128, max_tn)
    # Collapsed dense layout (keeps the zero off-diagonal blocks in place).
    Kdp, tkd = _pad_and_tile(num_in, 128, max_tk)
    Ndp, tnd = _pad_and_tile(num_out, 128, max_tn)

    # For tiny per-agent features the 128-lane padding blows up the per-agent
    # layout; the collapsed dense weight is then strictly smaller and runs
    # with a single (agent-free) grid that fills the MXU.
    use_dense = (A == 1) or (A * Kp * Np >= Kdp * Ndp)

    if use_dense:
        w_t = weight.T                                        # (num_in, num_out)
        w_pack = jnp.pad(w_t, ((0, Kdp - num_in), (0, Ndp - num_out)))
        w_pack = w_pack.astype(compute_dtype)
        b_pack = jnp.pad(bias, (0, Ndp - num_out)).astype(jnp.float32)
        b_pack = b_pack.reshape(1, Ndp)
        Kp, Np, tk, tn = Kdp, Ndp, tkd, tnd
    else:
        if check_block_diagonal and A > 1:
            row_agent = jnp.arange(num_out) // out_f
            col_agent = jnp.arange(num_in) // in_f
            offdiag = jnp.where(row_agent[:, None] == col_agent[None, :],
                                0.0, weight)
            off_max = float(jnp.max(jnp.abs(offdiag)))
            if off_max != 0.0:
                raise ValueError(
                    "pack_params: weight has nonzero inter-agent blocks "
                    f"(max |off-diag| = {off_max}); this module requires a "
                    "block-diagonal weight.")
        w4 = weight.reshape(A, out_f, A, in_f)
        idx = jnp.arange(A)
        w_diag = w4[idx, :, idx, :]                           # (A, out_f, in_f)
        w_t = jnp.transpose(w_diag, (0, 2, 1))                # (A, in_f, out_f)
        w_pack = jnp.pad(w_t, ((0, 0), (0, Kp - in_f), (0, Np - out_f)))
        w_pack = w_pack.astype(compute_dtype)
        b_pack = jnp.pad(bias.reshape(A, out_f), ((0, 0), (0, Np - out_f)))
        b_pack = b_pack.astype(jnp.float32).reshape(1, A * Np)

    return {
        "w": w_pack, "b": b_pack, "dense": bool(use_dense),
        "num_agents": A, "in_features": in_f, "out_features": out_f,
        "Kp": Kp, "Np": Np, "tk": tk, "tn": tn,
        "compute_dtype": jnp.dtype(compute_dtype),
    }


def init_linear_params(key, in_features, out_features, num_agents=1,
                       param_dtype=jnp.float32, compute_dtype=jnp.bfloat16,
                       max_tk=1024, max_tn=1024):
    """nn.Linear-style init (U(-1/sqrt(num_in))) + inter-agent zero masking."""
    num_in = in_features * num_agents
    num_out = out_features * num_agents
    kw, kb = jax.random.split(key)
    bound = 1.0 / math.sqrt(num_in)
    weight = jax.random.uniform(kw, (num_out, num_in), param_dtype,
                                minval=-bound, maxval=bound)
    bias = jax.random.uniform(kb, (num_out,), param_dtype,
                              minval=-bound, maxval=bound)
    if num_agents > 1:
        row_agent = jnp.arange(num_out) // out_features
        col_agent = jnp.arange(num_in) // in_features
        mask = (row_agent[:, None] == col_agent[None, :]).astype(param_dtype)
        weight = weight * mask
    packed = pack_params(weight, bias, in_features, out_features, num_agents,
                         compute_dtype=compute_dtype,
                         max_tk=max_tk, max_tn=max_tn)
    return weight, bias, packed


# -----------------------------------------------------------------------------
# Forward wrapper
# -----------------------------------------------------------------------------
def linear_forward(x, params, max_tm=512):
    """y = x @ W^T + b with block-diagonal W, computed on the MXU.

    x: (*, num_in) with num_in = num_agents * in_features (agent-major).
    Returns (*, num_out) with num_out = num_agents * out_features.
    """
    A = params["num_agents"]
    in_f, out_f = params["in_features"], params["out_features"]
    dense = params["dense"]
    w, b = params["w"], params["b"]
    Kp, Np, tk, tn = params["Kp"], params["Np"], params["tk"], params["tn"]
    cdt = params["compute_dtype"]
    num_in, num_out = A * in_f, A * out_f

    lead = x.shape[:-1]
    assert x.shape[-1] == num_in
    batch = int(reduce(mul, lead, 1))
    out_dtype = x.dtype
    if batch == 0:                       # 0-sized block would not lower
        return jnp.zeros(lead + (num_out,), out_dtype)

    Mp, tm = _pad_and_tile(batch, 8, max_tm)

    # No transposes anywhere: x is only cast + zero-padded.
    x2 = x.reshape(batch, num_in).astype(cdt)
    if dense:
        x_in = jnp.pad(x2, ((0, Mp - batch), (0, Kp - num_in)))
        n_cols = Np
    else:
        x3 = x2.reshape(batch, A, in_f)
        x3 = jnp.pad(x3, ((0, Mp - batch), (0, 0), (0, Kp - in_f)))
        x_in = x3.reshape(Mp, A * Kp)    # reshape of padded layout is free
        n_cols = A * Np

    m_tiles = Mp // tm
    n_tiles = Np // tn
    k_tiles = Kp // tk

    # Ensure >=2 parallel grid blocks so both v7x TensorCores get work.
    par_blocks = (1 if dense else A) * m_tiles * n_tiles
    if par_blocks == 1 and Mp >= 16 and Mp % 16 == 0:
        tm = Mp // 2
        m_tiles = 2

    if dense:
        grid = (m_tiles, n_tiles, k_tiles)
        in_specs = [
            pl.BlockSpec((tm, tk), lambda i, j, k: (i, k)),
            pl.BlockSpec((tk, tn), lambda i, j, k: (k, j)),
            pl.BlockSpec((1, tn), lambda i, j, k: (0, j)),
        ]
        out_spec = pl.BlockSpec((tm, tn), lambda i, j, k: (i, j))
        dims = ("parallel", "parallel", "arbitrary")
        flops = 2 * Mp * Kp * Np
    else:
        kpa, npa = Kp // tk, Np // tn
        grid = (A, m_tiles, n_tiles, k_tiles)
        in_specs = [
            pl.BlockSpec((tm, tk), lambda a, i, j, k: (i, a * kpa + k)),
            pl.BlockSpec((None, tk, tn), lambda a, i, j, k: (a, k, j)),
            pl.BlockSpec((1, tn), lambda a, i, j, k: (0, a * npa + j)),
        ]
        out_spec = pl.BlockSpec((tm, tn), lambda a, i, j, k: (i, a * npa + j))
        dims = ("parallel", "parallel", "parallel", "arbitrary")
        flops = 2 * Mp * A * Kp * Np

    if k_tiles == 1:
        kernel = _linear_fused_kernel
        scratch = []
    else:
        kernel = _make_acc_kernel(len(grid) - 1)
        scratch = [pltpu.VMEM((tm, tn), jnp.float32)]

    cdt_bytes = jnp.dtype(cdt).itemsize
    out_bytes = jnp.dtype(out_dtype).itemsize
    bytes_accessed = (x_in.size * cdt_bytes + w.size * cdt_bytes
                      + b.size * 4 + Mp * n_cols * out_bytes)
    cost = pl.CostEstimate(flops=flops, transcendentals=0,
                           bytes_accessed=bytes_accessed)

    # Per-step VMEM footprint (double-buffered in/out + accumulator); this is
    # a few MiB at the current caps — well inside v7x's 64 MiB per core and
    # v5e's smaller default scoped limit once we set it explicitly.
    step_bytes = (2 * (tm * tk + tk * tn) * cdt_bytes + 2 * tn * 4
                  + 2 * tm * tn * out_bytes
                  + (tm * tn * 4 if k_tiles > 1 else 0))
    vmem_limit = int(min(max(2 * step_bytes, 16 * 2**20), 40 * 2**20))

    y = pl.pallas_call(
        kernel,
        out_shape=jax.ShapeDtypeStruct((Mp, n_cols), out_dtype),
        grid=grid,
        in_specs=in_specs,
        out_specs=out_spec,
        scratch_shapes=scratch,
        compiler_params=pltpu.CompilerParams(
            dimension_semantics=dims, vmem_limit_bytes=vmem_limit),
        cost_estimate=cost,
    )(x_in, w, b)

    # De-pad (slice only; no transpose).
    if dense:
        y = y[:batch, :num_out]
    else:
        y = y.reshape(Mp, A, Np)[:batch, :, :out_f]
    return y.reshape(lead + (num_out,))


if __name__ == "__main__":
    key = jax.random.PRNGKey(0)
    k1, k2, k3, k4 = jax.random.split(key, 4)

    # --- Test 1: tiny per-agent features -> collapsed dense fast path -------
    in_f, out_f, A = 16, 8, 2            # num_in = 32, num_out = 16
    lead = (3, 4)
    weight, bias, params = init_linear_params(k1, in_f, out_f, A)
    x = jax.random.normal(k2, lead + (in_f * A,), jnp.float32)
    y = linear_forward(x, params)
    jax.block_until_ready(y)
    y_ref = x @ weight.T + bias
    assert y.shape == lead + (out_f * A,)
    err = float(jnp.max(jnp.abs(y - y_ref)))
    assert jnp.allclose(y, y_ref, atol=5e-2, rtol=5e-2), err

    # --- Test 2: larger per-agent features -> per-agent path with K tiling --
    in_f2, out_f2, A2 = 256, 200, 2
    weight2, bias2, params2 = init_linear_params(k3, in_f2, out_f2, A2,
                                                 max_tk=128)
    x2 = jax.random.normal(k4, (13, in_f2 * A2), jnp.float32)
    y2 = linear_forward(x2, params2)
    jax.block_until_ready(y2)
    y2_ref = x2 @ weight2.T + bias2
    assert y2.shape == (13, out_f2 * A2)
    err2 = float(jnp.max(jnp.abs(y2 - y2_ref)))
    assert jnp.allclose(y2, y2_ref, atol=5e-2, rtol=5e-2), err2

    print("KERNEL_OK")
</pallas_src>

<mosaic_0001>
module attributes {stable_mosaic.version = 11 : i64} {
  func.func @_linear_fused_kernel(%arg0: i32, %arg1: i32, %arg2: i32, %arg3: memref<8x128xbf16, #tpu.memory_space<vmem>>, %arg4: memref<128x128xbf16, #tpu.memory_space<vmem>>, %arg5: memref<1x128xf32, #tpu.memory_space<vmem>>, %arg6: memref<8x128xf32, #tpu.memory_space<vmem>>) attributes {dimension_semantics = [#tpu.dimension_semantics<parallel>, #tpu.dimension_semantics<parallel>, #tpu.dimension_semantics<arbitrary>], iteration_bounds = array<i64: 2, 1, 1>, scalar_prefetch = 0 : i64, scratch_operands = 0 : i64, tpu.core_type = #tpu.core_type<tc>, window_params = [{transform_indices = @transform_0, window_bounds = array<i64: 8, 128>}, {transform_indices = @transform_1, window_bounds = array<i64: 128, 128>}, {transform_indices = @transform_2, window_bounds = array<i64: 1, 128>}, {transform_indices = @transform_3, window_bounds = array<i64: 8, 128>}]} {
    %c0 = arith.constant 0 : index
    %c0_0 = arith.constant 0 : index
    %0 = vector.load %arg3[%c0, %c0_0] : memref<8x128xbf16, #tpu.memory_space<vmem>>, vector<8x128xbf16>
    %c0_1 = arith.constant 0 : index
    %c0_2 = arith.constant 0 : index
    %1 = vector.load %arg4[%c0_1, %c0_2] : memref<128x128xbf16, #tpu.memory_space<vmem>>, vector<128x128xbf16>
    %cst = arith.constant dense<0.000000e+00> : vector<8x128xf32>
    %2 = tpu.matmul %0, %1, %cst {dimension_numbers = #tpu.dot_dimension_numbers<[1], [0], [0], [1], [0, 0, 1, 1], [], []>} : vector<8x128xbf16>, vector<128x128xbf16>, vector<8x128xf32> -> vector<8x128xf32>
    %c0_3 = arith.constant 0 : index
    %c0_4 = arith.constant 0 : index
    %3 = vector.load %arg5[%c0_3, %c0_4] : memref<1x128xf32, #tpu.memory_space<vmem>>, vector<1x128xf32>
    %4 = vector.broadcast %3 : vector<1x128xf32> to vector<8x128xf32>
    %5 = arith.addf %2, %4 : vector<8x128xf32>
    %c0_5 = arith.constant 0 : index
    %c0_6 = arith.constant 0 : index
    %6 = vector.load %arg6[%c0_5, %c0_6] : memref<8x128xf32, #tpu.memory_space<vmem>>, vector<8x128xf32>
    tpu.vector_store %arg6[%c0_5, %c0_6], %5 {strides = array<i32>} : memref<8x128xf32, #tpu.memory_space<vmem>>, vector<8x128xf32>,
    return
  }
  func.func @transform_0(%arg0: i32, %arg1: i32, %arg2: i32) -> (i32, i32) {
    %c0_i32 = arith.constant 0 : i32
    return %arg0, %arg2 : i32, i32
  }
  func.func @transform_1(%arg0: i32, %arg1: i32, %arg2: i32) -> (i32, i32) {
    %c0_i32 = arith.constant 0 : i32
    return %arg2, %arg1 : i32, i32
  }
  func.func @transform_2(%arg0: i32, %arg1: i32, %arg2: i32) -> (i32, i32) {
    %c0_i32 = arith.constant 0 : i32
    %c0_i32_0 = arith.constant 0 : i32
    return %c0_i32, %arg1 : i32, i32
  }
  func.func @transform_3(%arg0: i32, %arg1: i32, %arg2: i32) -> (i32, i32) {
    %c0_i32 = arith.constant 0 : i32
    return %arg0, %arg1 : i32, i32
  }
}

</mosaic_0001>

<llo_original>
// kernel: tpu_custom_call.1
$region0: #{tpu_custom_call.1}
  #allocation0 [shape = 'u32[]', space=smem, size = 0x4, offset = 0x4, fixed_abs, tag = 'smem constant byte address 0x4 - core index']
  #allocation1 [shape = 'u32[144,128]{1,0:T(1,128)}', space=vmem, size = 0x12000, scoped, tag = 'internal scratch']
  %s0 = inlined_call_operand.hbm [shape: bf16[16,128], index: 0, kind: input, shape index: {}]
  %s1 = inlined_call_operand.hbm [shape: bf16[128,128], index: 1, kind: input, shape index: {}]
  %s2 = inlined_call_operand.vmem [shape: f32[1,128], index: 2, kind: input, shape index: {}]
  %s3 = inlined_call_operand.hbm [shape: f32[16,128], index: 3, kind: output, shape index: {}]
  %s4 = sld [smem:[#allocation0]]
  $region53: #{tpu_custom_call.1} parent=0
    _
  %s6 = ssub.s32 1, %s4
  %s7 = scalar_select 0, %s6, %s4
  $region1: #{tpu_custom_call.1} parent=0
    #allocation2 [shape = 'u8[4096]{0}', space=vmem, size = 0x1000, scoped, tag = 'input window, operand 0']
    #allocation3 [shape = 's32[2]{0}', space=sflag, size = 0x8, scoped, tag = 'scoped memory for tpu_custom_call.1']
    #allocation4 [shape = 's32[2]{0}', space=sflag, size = 0x8, scoped, tag = 'scoped memory for tpu_custom_call.1']
    #allocation5 [shape = 'u8[32768]{0}', space=vmem, size = 0x8000, scoped, tag = 'input window, operand 1, single buffered']
    #allocation6 [shape = 's32[1]{0}', space=sflag, size = 0x4, scoped, tag = 'scoped memory for tpu_custom_call.1']
    #allocation7 [shape = 'u8[8192]{0}', space=vmem, size = 0x2000, scoped, tag = 'output window, operand 0']
    %8 = vsyncpa [#allocation3], 0
    %s9 = scalar_lea.sflag [#allocation3], 1
    %10 = vsyncpa %s9, 0
    %11 = vsyncpa [#allocation6], 0
    %12 = vsyncpa [#allocation4], 0
    %s13 = scalar_lea.sflag [#allocation4], 1
    %14 = vsyncpa %s13, 0
    loop: start=0, step=1, limit=4
    $region2: #{tpu_custom_call.1} parent=1 // loop_pre_header
      _
    $region3: #{tpu_custom_call.1} parent=1 // loop_header
      %s16 = sphi 0, %s20
      %p17 = scmp.ge.s32.totalorder %s16, 4
      %s23 = sphi 0, %s42
      %s24 = sphi 0, %s38
      %s25 = sphi 0, %s34
      %s26 = sphi 0, %s23
      %s27 = sphi 0, %s24
      %s28 = sphi 0, %s25
      %s29 = sphi 0, %s26
      %s30 = sphi 0, %s27
      %s31 = sphi 0, %s28
      %s47 = sphi 0, %s49
      %s50 = sphi 0, %s47
      %s51 = sphi 0, %s50
      %s67 = sphi 0, %s51
      %s75 = sphi 0, %s77
      %s78 = sphi 0, %s75
      %s79 = sphi 0, %s78
      %s95 = sphi 0, %s79
      %s101 = sphi 0, %s103
      %s104 = sphi 0, %s101
      %s105 = sphi 0, %s104
      %s121 = sphi 0, %s105
      %s129 = sphi 0, %s131
      %s132 = sphi 0, %s129
      %s133 = sphi 0, %s132
      %s149 = sphi 0, %s133
    $region4: #{tpu_custom_call.1} parent=1 // loop_header_branch
      %19 = sbr.rel (%p17) target = $region8
    $region5: #{tpu_custom_call.1} parent=1 // loop_body
      %s21 = ssub.s32 %s16, 1
      %s22 = ssub.s32 %s16, 2
      %s32 = sadd.s32 1, %s25
      %p33 = scmp.ge.s32.totalorder %s32, 1
      %s34 = scalar_select %p33, 0, %s32
      %s35 = sadd.s32 1, %s24
      %s36 = scalar_select %p33, %s35, %s24
      %p37 = scmp.ge.s32.totalorder %s36, 1
      %s38 = scalar_select %p37, 0, %s36
      %s39 = sadd.s32 1, %s23
      %s40 = scalar_select %p37, %s39, %s23
      %p41 = scmp.ge.s32.totalorder %s40, 2
      %s42 = scalar_select %p41, 0, %s40
      %s43 = ssub.s32 %s23, %s42
      %s44 = ssub.s32 %s25, %s34
      %s45 = sor.u32 %s43, %s44
      %p46 = scmp.eq.s32.totalorder %s45, 0
      %s48 = sadd.s32 %s47, 1
      %s49 = scalar_select %p46, %s47, %s48
      %p52 = pneg %p46
      %p53 = scmp.eq.s32.totalorder %s16, 1
      %p54 = por %p52, %p53
      %p55 = scmp.ne.s32.totalorder %s47, %s50
      %p56 = scmp.eq.s32.totalorder %s16, 0
      %p57 = por %p55, %p56
      %p58 = scmp.ne.s32.totalorder %s47, %s50
      %p59 = scmp.eq.s32.totalorder %s21, 1
      %p60 = por %p58, %p59
      %p61 = scmp.ne.s32.totalorder %s50, %s51
      %p62 = scmp.eq.s32.totalorder %s21, 0
      %p63 = por %p61, %p62
      %p64 = scmp.ne.s32.totalorder %s50, %s51
      %p65 = scmp.eq.s32.totalorder %s22, 1
      %p66 = por %p64, %p65
      %p68 = scmp.ne.s32.totalorder %s51, %s67
      %p69 = scmp.eq.s32.totalorder %s22, 0
      %p70 = por %p68, %p69
      %s71 = ssub.s32 %s25, %s34
      %s72 = ssub.s32 %s24, %s38
      %s73 = sor.u32 %s71, %s72
      %p74 = scmp.eq.s32.totalorder %s73, 0
      %s76 = sadd.s32 %s75, 1
      %s77 = scalar_select %p74, %s75, %s76
      %p80 = pneg %p74
      %p81 = scmp.eq.s32.totalorder %s16, 1
      %p82 = por %p80, %p81
      %p83 = scmp.ne.s32.totalorder %s75, %s78
      %p84 = scmp.eq.s32.totalorder %s16, 0
      %p85 = por %p83, %p84
      %p86 = scmp.ne.s32.totalorder %s75, %s78
      %p87 = scmp.eq.s32.totalorder %s21, 1
      %p88 = por %p86, %p87
      %p89 = scmp.ne.s32.totalorder %s78, %s79
      %p90 = scmp.eq.s32.totalorder %s21, 0
      %p91 = por %p89, %p90
      %p92 = scmp.ne.s32.totalorder %s78, %s79
      %p93 = scmp.eq.s32.totalorder %s22, 1
      %p94 = por %p92, %p93
      %p96 = scmp.ne.s32.totalorder %s79, %s95
      %p97 = scmp.eq.s32.totalorder %s22, 0
      %p98 = por %p96, %p97
      %s99 = ssub.s32 %s24, %s38
      %p100 = scmp.eq.s32.totalorder %s99, 0
      %s102 = sadd.s32 %s101, 1
      %s103 = scalar_select %p100, %s101, %s102
      %p106 = pneg %p100
      %p107 = scmp.eq.s32.totalorder %s16, 1
      %p108 = por %p106, %p107
      %p109 = scmp.ne.s32.totalorder %s101, %s104
      %p110 = scmp.eq.s32.totalorder %s16, 0
      %p111 = por %p109, %p110
      %p112 = scmp.ne.s32.totalorder %s101, %s104
      %p113 = scmp.eq.s32.totalorder %s21, 1
      %p114 = por %p112, %p113
      %p115 = scmp.ne.s32.totalorder %s104, %s105
      %p116 = scmp.eq.s32.totalorder %s21, 0
      %p117 = por %p115, %p116
      %p118 = scmp.ne.s32.totalorder %s104, %s105
      %p119 = scmp.eq.s32.totalorder %s22, 1
      %p120 = por %p118, %p119
      %p122 = scmp.ne.s32.totalorder %s105, %s121
      %p123 = scmp.eq.s32.totalorder %s22, 0
      %p124 = por %p122, %p123
      %s125 = ssub.s32 %s23, %s42
      %s126 = ssub.s32 %s24, %s38
      %s127 = sor.u32 %s125, %s126
      %p128 = scmp.eq.s32.totalorder %s127, 0
      %s130 = sadd.s32 %s129, 1
      %s131 = scalar_select %p128, %s129, %s130
      %p134 = pneg %p128
      %p135 = scmp.eq.s32.totalorder %s16, 1
      %p136 = por %p134, %p135
      %p137 = scmp.ne.s32.totalorder %s129, %s132
      %p138 = scmp.eq.s32.totalorder %s16, 0
      %p139 = por %p137, %p138
      %p140 = scmp.ne.s32.totalorder %s129, %s132
      %p141 = scmp.eq.s32.totalorder %s21, 1
      %p142 = por %p140, %p141
      %p143 = scmp.ne.s32.totalorder %s132, %s133
      %p144 = scmp.eq.s32.totalorder %s21, 0
      %p145 = por %p143, %p144
      %p146 = scmp.ne.s32.totalorder %s132, %s133
      %p147 = scmp.eq.s32.totalorder %s22, 1
      %p148 = por %p146, %p147
      %p150 = scmp.ne.s32.totalorder %s133, %s149
      %p151 = scmp.eq.s32.totalorder %s22, 0
      %p152 = por %p150, %p151
      %p153 = scmp.le.s32.totalorder 1, %s16
      %p154 = scmp.lt.s32.totalorder %s16, 3
      %p155 = pnand %p153, %p154
      %p156 = pneg %p155
      // Predicated region
      $region9: #{tpu_custom_call.1} parent=5 // pred_check
        _
      $region10: #{tpu_custom_call.1} parent=5 // pred_check_branch
        %158 = sbr.rel (%p155) target = $region12
      $region11: #{tpu_custom_call.1} parent=5 // pred_region
        %s159 = ssub.s32 %s16, 1
        // Predicated region
        $region13: #{tpu_custom_call.1} parent=11 // pred_check
          %p160 = pneg %p91
        $region14: #{tpu_custom_call.1} parent=11 // pred_check_branch
          %162 = sbr.rel (%p160) target = $region16
        $region15: #{tpu_custom_call.1} parent=11 // pred_region
          %s163 = smul.u32 16, %s28
          %s165 = ssub.s32 1024, 1024
          %166 = vsyncadd [#allocation6], %s165
          %s167 = sadd.s32 %s27, %s163
          %s168 = smul.addr %s167, 64
          %s169 = scalar_lea.hbm %s1, %s168
          %s170 = sshll.u32 [#allocation5], 4
          %s171 = int_to_ptr.vmem [resolvable:$true] %s170
          %176 = dma.hbm_to_vmem [thread:$0]  %s169, 1024, %s171, [#allocation6], 64, 64, 4
        $region16: #{tpu_custom_call.1} parent=11 // pred_fallthru
          _
        // Predicated region
        $region17: #{tpu_custom_call.1} parent=11 // pred_check
          %p177 = pneg %p117
        $region18: #{tpu_custom_call.1} parent=11 // pred_check_branch
          %179 = sbr.rel (%p177) target = $region20
        $region19: #{tpu_custom_call.1} parent=11 // pred_region
          %p180 = scmp.lt.s32.totalorder %s27, 0
          %s181 = scalar_select %p180, %s27, 0
          %s182 = scalar_lea.vmem %s2, %s181
        $region20: #{tpu_custom_call.1} parent=11 // pred_fallthru
          _
      $region12: #{tpu_custom_call.1} parent=5 // pred_fallthru
        _
      %p183 = scmp.lt.s32.totalorder %s16, 2
      // Predicated region
      $region21: #{tpu_custom_call.1} parent=5 // pred_check
        %p184 = pneg %p183
      $region22: #{tpu_custom_call.1} parent=5 // pred_check_branch
        %186 = sbr.rel (%p184) target = $region24
      $region23: #{tpu_custom_call.1} parent=5 // pred_region
        // Predicated region
        $region25: #{tpu_custom_call.1} parent=23 // pred_check
          %p187 = pneg %p57
        $region26: #{tpu_custom_call.1} parent=23 // pred_check_branch
          %189 = sbr.rel (%p187) target = $region28
        $region27: #{tpu_custom_call.1} parent=23 // pred_region
          %s190 = sand.u32 %s47, 1
          %s191 = scalar_lea.sflag [#allocation3], %s190
          %s192 = sand.u32 %s47, 1
          %s193 = smul.addr %s192, 4
          %s194 = scalar_lea.vmem [#allocation2], %s193
          %s196 = ssub.s32 64, 64
          %197 = vsyncadd %s191, %s196
          %s198 = sadd.s32 %s25, %s23
          %s199 = smul.addr %s198, 64
          %s200 = scalar_lea.hbm %s0, %s199
          %s202 = sshll.u32 %s194, 4
          %s203 = int_to_ptr.vmem [resolvable:$true] %s202
          %205 = dma.hbm_to_vmem [thread:$0]  %s200, 64, %s203, %s191
        $region28: #{tpu_custom_call.1} parent=23 // pred_fallthru
          _
      $region24: #{tpu_custom_call.1} parent=5 // pred_fallthru
        _
      %p206 = scmp.le.s32.totalorder 1, %s16
      %p207 = scmp.lt.s32.totalorder %s16, 3
      %p208 = pnand %p206, %p207
      %p209 = pneg %p208
      // Predicated region
      $region29: #{tpu_custom_call.1} parent=5 // pred_check
        _
      $region30: #{tpu_custom_call.1} parent=5 // pred_check_branch
        %211 = sbr.rel (%p208) target = $region32
      $region31: #{tpu_custom_call.1} parent=5 // pred_region
        %s212 = ssub.s32 %s16, 1
        %s213 = sand.u32 %s50, 1
        %s214 = scalar_lea.sflag [#allocation3], %s213
        %s215 = sand.u32 %s50, 1
        %s216 = smul.addr %s215, 4
        %s217 = scalar_lea.vmem [#allocation2], %s216
        // Predicated region
        $region33: #{tpu_custom_call.1} parent=31 // pred_check
          %p218 = pneg %p63
        $region34: #{tpu_custom_call.1} parent=31 // pred_check_branch
          %220 = sbr.rel (%p218) target = $region36
        $region35: #{tpu_custom_call.1} parent=31 // pred_region
          %221 = dma.done %s214, 64
        $region36: #{tpu_custom_call.1} parent=31 // pred_fallthru
          _
        // Predicated region
        $region37: #{tpu_custom_call.1} parent=31 // pred_check
          %p222 = pneg %p91
        $region38: #{tpu_custom_call.1} parent=31 // pred_check_branch
          %224 = sbr.rel (%p222) target = $region40
        $region39: #{tpu_custom_call.1} parent=31 // pred_region
          %225 = dma.done [#allocation6], 1024
        $region40: #{tpu_custom_call.1} parent=31 // pred_fallthru
          _
        %s226 = sand.u32 %s50, 1
        %s227 = scalar_lea.sflag [#allocation3], %s226
        %s228 = sand.u32 %s50, 1
        %s229 = smul.addr %s228, 4
        %s230 = scalar_lea.vmem [#allocation2], %s229
        %p231 = pneg %p63
        %p232 = pneg %p60
        %p233 = pneg %p91
        %p234 = pneg %p88
        %p235 = scmp.lt.s32.totalorder %s27, 0
        %s236 = scalar_select %p235, %s27, 0
        %s237 = scalar_lea.vmem %s2, %s236
        %p238 = pneg %p117
        %p239 = pneg %p114
        %p240 = pneg %p145
        %p241 = pneg %p142
        %s242 = sand.u32 %s132, 1
        %s243 = scalar_lea.sflag [#allocation4], %s242
        %s244 = sand.u32 %s132, 1
        %s245 = smul.addr %s244, 8
        %s246 = scalar_lea.vmem [#allocation7], %s245
        %s247 = smul.u32 16, %s28
        %p248 = scmp.lt.s32.totalorder %s27, 0
        %s249 = scalar_select %p248, %s27, 0
        %s250 = scalar_lea.vmem %s2, %s249
        %v252 = vld [vmem:[%s217] sm:$0xf]
        %v253 = vld [vmem:[#allocation5] sm:$0xf]
        %v254 = vld [vmem:[#allocation5 + $0x4] sm:$0xf]
        %v255 = vld [vmem:[#allocation5 + $0x8] sm:$0xf]
        %v256 = vld [vmem:[#allocation5 + $0xc] sm:$0xf]
        %v257 = vld [vmem:[#allocation5 + $0x10] sm:$0xf]
        %v258 = vld [vmem:[#allocation5 + $0x14] sm:$0xf]
        %v259 = vld [vmem:[#allocation5 + $0x18] sm:$0xf]
        %v260 = vld [vmem:[#allocation5 + $0x1c] sm:$0xf]
        %v261 = vld [vmem:[#allocation5 + $0x20] sm:$0xf]
        %v262 = vld [vmem:[#allocation5 + $0x24] sm:$0xf]
        %v263 = vld [vmem:[#allocation5 + $0x28] sm:$0xf]
        %v264 = vld [vmem:[#allocation5 + $0x2c] sm:$0xf]
        %v265 = vld [vmem:[#allocation5 + $0x30] sm:$0xf]
        %v266 = vld [vmem:[#allocation5 + $0x34] sm:$0xf]
        %v267 = vld [vmem:[#allocation5 + $0x38] sm:$0xf]
        %v268 = vld [vmem:[#allocation5 + $0x3c] sm:$0xf]
        %v269 = vld [vmem:[%s250] sm:$0x1]
        %v271 = vlaneseq
        %v272 = vshrl.u32 %v271, 7
        %v273 = vsub.s32 0, %v272
        %v274 = vrot.slane %v269, %v273
        %v292 = vunpack.c.l.b16 %v253
        %v293 = vunpack.c.l.b16 %v254
        %v294 = vunpack.c.l.b16 %v255
        %v295 = vunpack.c.l.b16 %v256
        %v296 = vunpack.c.l.b16 %v257
        %v297 = vunpack.c.l.b16 %v258
        %v298 = vunpack.c.l.b16 %v259
        %v299 = vunpack.c.l.b16 %v260
        %v300 = vunpack.c.l.b16 %v261
        %v301 = vunpack.c.l.b16 %v262
        %v302 = vunpack.c.l.b16 %v263
        %v303 = vunpack.c.l.b16 %v264
        %v304 = vunpack.c.l.b16 %v265
        %v305 = vunpack.c.l.b16 %v266
        %v306 = vunpack.c.l.b16 %v267
        %v307 = vunpack.c.l.b16 %v268
        %v308 = vpack.c.b16 %v293, %v292
        %v309 = vpack.c.b16 %v295, %v294
        %v310 = vpack.c.b16 %v297, %v296
        %v311 = vpack.c.b16 %v299, %v298
        %v312 = vpack.c.b16 %v301, %v300
        %v313 = vpack.c.b16 %v303, %v302
        %v314 = vpack.c.b16 %v305, %v304
        %v315 = vpack.c.b16 %v307, %v306
        %324 = vmatprep.subr.bf16.mxu0 0
        %325 = vmatpush1.bf16.msra.mxu0 %v308
        %326 = vmatprep.subr.bf16.mxu0 0
        %327 = vmatpush1.bf16.msra.mxu0 %v309
        %328 = vmatprep.subr.bf16.mxu0 0
        %329 = vmatpush1.bf16.msra.mxu0 %v310
        %330 = vmatprep.subr.bf16.mxu0 0
        %331 = vmatpush1.bf16.msra.mxu0 %v311
        %332 = vmatprep.subr.bf16.mxu0 0
        %333 = vmatpush1.bf16.msra.mxu0 %v312
        %334 = vmatprep.subr.bf16.mxu0 0
        %335 = vmatpush1.bf16.msra.mxu0 %v313
        %336 = vmatprep.subr.bf16.mxu0 0
        %337 = vmatpush1.bf16.msra.mxu0 %v314
        %338 = vmatprep.subr.bf16.mxu0 0
        %339 = vmatpush1.bf16.msra.mxu0 %v315
        %340 = vmatprep.subr.bf16.mxu0 0
        %341 = vmatpush1.bf16.msra.mxu0 0
        %342 = vmatprep.subr.bf16.mxu0 0
        %343 = vmatpush1.bf16.msra.mxu0 0
        %344 = vmatprep.subr.bf16.mxu0 0
        %345 = vmatpush1.bf16.msra.mxu0 0
        %346 = vmatprep.subr.bf16.mxu0 0
        %347 = vmatpush1.bf16.msra.mxu0 0
        %348 = vmatprep.subr.bf16.mxu0 0
        %349 = vmatpush1.bf16.msra.mxu0 0
        %350 = vmatprep.subr.bf16.mxu0 0
        %351 = vmatpush1.bf16.msra.mxu0 0
        %352 = vmatprep.subr.bf16.mxu0 0
        %353 = vmatpush1.bf16.msra.mxu0 0
        %354 = vmatprep.subr.bf16.mxu0 0
        %355 = vmatpush1.bf16.msra.mxu0 0
        %356 = vmatprep.mubr.bf16.mxu0 0
        %357 = vmatmul.mubr.bf16.gmra.mrb[0].mxu0 %v252
        %v358 = vpop.f32.mrb[0].mxu0
        %v359 = vadd.f32 %v274, %v358
        %v360 = vpop.f32.mrb[0].mxu0
        %v361 = vpop.f32.mrb[0].mxu0
        %v362 = vpop.f32.mrb[0].mxu0
        %363 = vdwg.mxu0
        %364 = vst [vmem:[%s246] sm:$0xff] %v359
        %s365 = sand.u32 %s132, 1
        %s366 = scalar_lea.sflag [#allocation4], %s365
        %s367 = sand.u32 %s132, 1
        %s368 = smul.addr %s367, 8
        %s369 = scalar_lea.vmem [#allocation7], %s368
        // Predicated region
        $region41: #{tpu_custom_call.1} parent=31 // pred_check
          %p370 = pneg %p142
        $region42: #{tpu_custom_call.1} parent=31 // pred_check_branch
          %372 = sbr.rel (%p370) target = $region44
        $region43: #{tpu_custom_call.1} parent=31 // pred_region
          %s374 = ssub.s32 128, 128
          %375 = vsyncadd %s366, %s374
          %s376 = sadd.s32 %s27, %s26
          %s377 = smul.addr %s376, 128
          %s378 = scalar_lea.hbm %s3, %s377
          %s380 = sshll.u32 %s369, 4
          %s381 = int_to_ptr.vmem [resolvable:$true] %s380
          %383 = dma.vmem_to_hbm [thread:$0]  %s381, 128, %s378, %s366
        $region44: #{tpu_custom_call.1} parent=31 // pred_fallthru
          _
      $region32: #{tpu_custom_call.1} parent=5 // pred_fallthru
        _
      %p384 = scmp.le.s32.totalorder 2, %s16
      // Predicated region
      $region45: #{tpu_custom_call.1} parent=5 // pred_check
        %p385 = pneg %p384
      $region46: #{tpu_custom_call.1} parent=5 // pred_check_branch
        %387 = sbr.rel (%p385) target = $region48
      $region47: #{tpu_custom_call.1} parent=5 // pred_region
        %s388 = ssub.s32 %s16, 2
        // Predicated region
        $region49: #{tpu_custom_call.1} parent=47 // pred_check
          %p389 = pneg %p148
        $region50: #{tpu_custom_call.1} parent=47 // pred_check_branch
          %391 = sbr.rel (%p389) target = $region52
        $region51: #{tpu_custom_call.1} parent=47 // pred_region
          %s392 = sand.u32 %s133, 1
          %s393 = scalar_lea.sflag [#allocation4], %s392
          %s394 = sand.u32 %s133, 1
          %s395 = smul.addr %s394, 8
          %s396 = scalar_lea.vmem [#allocation7], %s395
          %397 = dma.done %s393, 128
        $region52: #{tpu_custom_call.1} parent=47 // pred_fallthru
          _
      $region48: #{tpu_custom_call.1} parent=5 // pred_fallthru
        _
    $region6: #{tpu_custom_call.1} parent=1 // loop_footer
      %s20 = sadd.s32 1, %s16
    $region7: #{tpu_custom_call.1} parent=1 // loop_footer_branch
      %15 = sbr.rel target = $region3
    $region8: #{tpu_custom_call.1} parent=1 // loop_exit
      _
    %398 = vsyncpa [#allocation3], 1
    %s399 = scalar_lea.sflag [#allocation3], 1
    %400 = vsyncpa %s399, 1
    %401 = vsyncpa [#allocation6], 1
    %402 = vsyncpa [#allocation4], 1
    %s403 = scalar_lea.sflag [#allocation4], 1
    %404 = vsyncpa %s403, 1

</llo_original>
